<compile_context>
chip_gen: v5e
topology: v5e:2x2
jax: 0.10.0
libtpu: 0.0.40
codegen_flags: <defaults>
</compile_context>

<pallas_src>
import functools

import jax
import jax.numpy as jnp
from jax.experimental import pallas as pl
from jax.experimental.pallas import tpu as pltpu

STATE_DIM = 9
ACTION_DIM = 3
IN_DIM = STATE_DIM + ACTION_DIM   # 12
H1 = 256
H2 = 128
OUT_DIM = 1


def _critic_kernel(s_ref, a_ref, w1s_ref, w1a_ref, b1_ref,
                   w2_ref, b2_ref, w3_ref, b3_ref, q_ref, *, use_bf16):
    # One batch tile (TB rows) per grid step; all weights resident in VMEM.
    cdt = jnp.bfloat16 if use_bf16 else jnp.float32

    s = s_ref[...].astype(cdt)                                     # (TB, 9)
    a = a_ref[...].astype(cdt)                                     # (TB, 3)

    # Layer 1: split matmul replaces the host-side concat([state, action]).
    h1 = (jnp.dot(s, w1s_ref[...].astype(cdt), preferred_element_type=jnp.float32)
          + jnp.dot(a, w1a_ref[...].astype(cdt), preferred_element_type=jnp.float32))
    h1 = jnp.maximum(h1 + b1_ref[...], 0.0)                        # (TB, 256) f32

    # Layer 2: main MXU matmul.
    h2 = jnp.dot(h1.astype(cdt), w2_ref[...].astype(cdt),
                 preferred_element_type=jnp.float32)
    h2 = jnp.maximum(h2 + b2_ref[...], 0.0)                        # (TB, 128) f32

    # Layer 3 (out_features = 1): contract the feature axis of h2 against the
    # (1, 128) weight row in the transposed orientation so the result is a
    # natively lane-dense (1, TB) row (no (TB,1) masked stores, no relayout).
    # Extra MXU work is <1% of layer 2.
    q_row = jnp.einsum("ok,bk->ob", w3_ref[...].astype(cdt), h2.astype(cdt),
                       preferred_element_type=jnp.float32)          # (1, TB)
    q_ref[...] = (q_row + b3_ref[...]).astype(q_ref.dtype)


def _round_up(x, m):
    return ((x + m - 1) // m) * m


@functools.partial(jax.jit, static_argnames=("batch_tile", "use_bf16"))
def critic_forward(state, action, params, batch_tile=512, use_bf16=False):
    """Pallas implementation of Critic.forward(state, action) -> (B, 1)."""
    w1, b1, w2, b2, w3, b3 = params
    B = state.shape[0]

    # Trace-time weight plumbing (tiny, constant under jit):
    w1_s = w1[:STATE_DIM]            # (9, 256)
    w1_a = w1[STATE_DIM:]            # (3, 256)
    w3_row = w3.reshape(1, H2)       # (1, 128) row for the transposed layer-3 dot

    # Tile selection: one full tile for small batches; otherwise a 128-multiple
    # tile so the lane-dense (1, TB) output blocks stay aligned and the grid
    # has >=2 steps for megacore sharding on large batches.
    if B <= batch_tile:
        tb = max(8, _round_up(B, 8))
    else:
        tb = max(128, 128 * (batch_tile // 128))
    Bp = _round_up(B, tb)
    n_tiles = Bp // tb

    if Bp != B:  # pad tail tile with zeros; padded rows are sliced off below
        state = jnp.pad(state, ((0, Bp - B), (0, 0)))
        action = jnp.pad(action, ((0, Bp - B), (0, 0)))

    const = lambda i: (0, 0)
    in_specs = [
        pl.BlockSpec((tb, STATE_DIM), lambda i: (i, 0)),    # state
        pl.BlockSpec((tb, ACTION_DIM), lambda i: (i, 0)),   # action
        pl.BlockSpec((STATE_DIM, H1), const),               # w1_s
        pl.BlockSpec((ACTION_DIM, H1), const),              # w1_a
        pl.BlockSpec((1, H1), const),                       # b1
        pl.BlockSpec((H1, H2), const),                      # w2
        pl.BlockSpec((1, H2), const),                       # b2
        pl.BlockSpec((1, H2), const),                       # w3_row
        pl.BlockSpec((1, OUT_DIM), const),                  # b3
    ]
    # Lane-dense output: a single (1, Bp) row, each grid step owns columns
    # [i*tb, (i+1)*tb).
    out_specs = pl.BlockSpec((1, tb), lambda i: (0, i))

    q_row = pl.pallas_call(
        functools.partial(_critic_kernel, use_bf16=use_bf16),
        out_shape=jax.ShapeDtypeStruct((1, Bp), jnp.float32),
        grid_spec=pltpu.PrefetchScalarGridSpec(
            num_scalar_prefetch=0,
            grid=(n_tiles,),
            in_specs=in_specs,
            out_specs=out_specs,
        ),
        compiler_params=pltpu.CompilerParams(
            dimension_semantics=("parallel",),
        ),
    )(state, action, w1_s, w1_a, b1, w2, b2, w3_row, b3)

    return q_row[0, :B].reshape(B, OUT_DIM)


def init_critic_params(key):
    """Deterministic init mimicking nn.Linear's U(-1/sqrt(fan_in), 1/sqrt(fan_in)).

    Weights are stored as (in_features, out_features) — transposed relative to
    PyTorch's (out, in) — so the kernel computes x @ W + b.
    """
    keys = jax.random.split(key, 6)

    def lin(kw, kb, fan_in, fan_out):
        bound = 1.0 / jnp.sqrt(jnp.float32(fan_in))
        w = jax.random.uniform(kw, (fan_in, fan_out), jnp.float32, -bound, bound)
        b = jax.random.uniform(kb, (1, fan_out), jnp.float32, -bound, bound)
        return w, b

    w1, b1 = lin(keys[0], keys[1], IN_DIM, H1)
    w2, b2 = lin(keys[2], keys[3], H1, H2)
    w3, b3 = lin(keys[4], keys[5], H2, OUT_DIM)
    return (w1, b1, w2, b2, w3, b3)


def critic_forward_ref(state, action, params):
    """Pure-JAX reference for correctness check."""
    w1, b1, w2, b2, w3, b3 = params
    sa = jnp.concatenate([state, action], axis=1)
    h1 = jnp.maximum(sa @ w1 + b1, 0.0)
    h2 = jnp.maximum(h1 @ w2 + b2, 0.0)
    return h2 @ w3 + b3


# TODO(synk): train_critic (Adam step + smooth_l1_loss backward) is a training
# routine, not part of the forward pass, and is not implemented here.

if __name__ == "__main__":
    key = jax.random.PRNGKey(0)
    kp, ks, ka = jax.random.split(key, 3)

    params = init_critic_params(kp)

    # Small batch (single-tile path).
    B = 8
    state = jax.random.normal(ks, (B, STATE_DIM), jnp.float32)
    action = jax.random.normal(ka, (B, ACTION_DIM), jnp.float32)

    q = jax.block_until_ready(critic_forward(state, action, params))
    q_ref = critic_forward_ref(state, action, params)
    assert q.shape == (B, OUT_DIM)
    assert jnp.allclose(q, q_ref, atol=1e-4, rtol=1e-4), "f32 small-batch mismatch"

    # Ragged larger batch (multi-tile + tail-padding path, 3 parallel tiles).
    B2 = 300
    ks2, ka2 = jax.random.split(ks)
    state2 = jax.random.normal(ks2, (B2, STATE_DIM), jnp.float32)
    action2 = jax.random.normal(ka2, (B2, ACTION_DIM), jnp.float32)
    q2 = jax.block_until_ready(
        critic_forward(state2, action2, params, batch_tile=128))
    q2_ref = critic_forward_ref(state2, action2, params)
    assert q2.shape == (B2, OUT_DIM)
    assert jnp.allclose(q2, q2_ref, atol=1e-4, rtol=1e-4), "f32 multi-tile mismatch"

    # bf16-MXU fast path (v6e/v7x); elementwise math stays f32.
    q3 = jax.block_until_ready(
        critic_forward(state2, action2, params, batch_tile=128, use_bf16=True))
    assert q3.shape == (B2, OUT_DIM)
    assert jnp.allclose(q3, q2_ref, atol=0.15, rtol=0.05), "bf16 mismatch"

    print("KERNEL_OK")
</pallas_src>

<mosaic_0001>
module attributes {stable_mosaic.version = 11 : i64} {
  func.func @_critic_kernel(%arg0: i32, %arg1: memref<8x9xf32, #tpu.memory_space<vmem>>, %arg2: memref<8x3xf32, #tpu.memory_space<vmem>>, %arg3: memref<9x256xf32, #tpu.memory_space<vmem>>, %arg4: memref<3x256xf32, #tpu.memory_space<vmem>>, %arg5: memref<1x256xf32, #tpu.memory_space<vmem>>, %arg6: memref<256x128xf32, #tpu.memory_space<vmem>>, %arg7: memref<1x128xf32, #tpu.memory_space<vmem>>, %arg8: memref<1x128xf32, #tpu.memory_space<vmem>>, %arg9: memref<1x1xf32, #tpu.memory_space<vmem>>, %arg10: memref<1x8xf32, #tpu.memory_space<vmem>>) attributes {dimension_semantics = [#tpu.dimension_semantics<parallel>], iteration_bounds = array<i64: 1>, scalar_prefetch = 0 : i64, scratch_operands = 0 : i64, tpu.core_type = #tpu.core_type<tc>, window_params = [{transform_indices = @transform_0, window_bounds = array<i64: 8, 9>}, {transform_indices = @transform_1, window_bounds = array<i64: 8, 3>}, {pipeline_mode = #tpu.pipeline_mode<synchronous>, transform_indices = @transform_2, window_bounds = array<i64: 9, 256>}, {pipeline_mode = #tpu.pipeline_mode<synchronous>, transform_indices = @transform_3, window_bounds = array<i64: 3, 256>}, {pipeline_mode = #tpu.pipeline_mode<synchronous>, transform_indices = @transform_4, window_bounds = array<i64: 1, 256>}, {pipeline_mode = #tpu.pipeline_mode<synchronous>, transform_indices = @transform_5, window_bounds = array<i64: 256, 128>}, {pipeline_mode = #tpu.pipeline_mode<synchronous>, transform_indices = @transform_6, window_bounds = array<i64: 1, 128>}, {pipeline_mode = #tpu.pipeline_mode<synchronous>, transform_indices = @transform_7, window_bounds = array<i64: 1, 128>}, {pipeline_mode = #tpu.pipeline_mode<synchronous>, transform_indices = @transform_8, window_bounds = array<i64: 1, 1>}, {transform_indices = @transform_9, window_bounds = array<i64: 1, 8>}]} {
    %c0 = arith.constant 0 : index
    %c0_0 = arith.constant 0 : index
    %0 = vector.load %arg1[%c0, %c0_0] : memref<8x9xf32, #tpu.memory_space<vmem>>, vector<8x9xf32>
    %c0_1 = arith.constant 0 : index
    %c0_2 = arith.constant 0 : index
    %1 = vector.load %arg2[%c0_1, %c0_2] : memref<8x3xf32, #tpu.memory_space<vmem>>, vector<8x3xf32>
    %c0_3 = arith.constant 0 : index
    %c0_4 = arith.constant 0 : index
    %2 = vector.load %arg3[%c0_3, %c0_4] : memref<9x256xf32, #tpu.memory_space<vmem>>, vector<9x256xf32>
    %cst = arith.constant dense<0.000000e+00> : vector<8x256xf32>
    %3 = tpu.matmul %0, %2, %cst {dimension_numbers = #tpu.dot_dimension_numbers<[1], [0], [0], [1], [0, 0, 1, 1], [], []>} : vector<8x9xf32>, vector<9x256xf32>, vector<8x256xf32> -> vector<8x256xf32>
    %c0_5 = arith.constant 0 : index
    %c0_6 = arith.constant 0 : index
    %4 = vector.load %arg4[%c0_5, %c0_6] : memref<3x256xf32, #tpu.memory_space<vmem>>, vector<3x256xf32>
    %cst_7 = arith.constant dense<0.000000e+00> : vector<8x256xf32>
    %5 = tpu.matmul %1, %4, %cst_7 {dimension_numbers = #tpu.dot_dimension_numbers<[1], [0], [0], [1], [0, 0, 1, 1], [], []>} : vector<8x3xf32>, vector<3x256xf32>, vector<8x256xf32> -> vector<8x256xf32>
    %6 = arith.addf %3, %5 : vector<8x256xf32>
    %c0_8 = arith.constant 0 : index
    %c0_9 = arith.constant 0 : index
    %7 = vector.load %arg5[%c0_8, %c0_9] : memref<1x256xf32, #tpu.memory_space<vmem>>, vector<1x256xf32>
    %8 = vector.broadcast %7 : vector<1x256xf32> to vector<8x256xf32>
    %9 = arith.addf %6, %8 : vector<8x256xf32>
    %cst_10 = arith.constant 0.000000e+00 : f32
    %10 = vector.broadcast %cst_10 : f32 to vector<8x256xf32>
    %11 = arith.maximumf %9, %10 : vector<8x256xf32>
    %c0_11 = arith.constant 0 : index
    %c0_12 = arith.constant 0 : index
    %12 = vector.load %arg6[%c0_11, %c0_12] : memref<256x128xf32, #tpu.memory_space<vmem>>, vector<256x128xf32>
    %cst_13 = arith.constant dense<0.000000e+00> : vector<8x128xf32>
    %13 = tpu.matmul %11, %12, %cst_13 {dimension_numbers = #tpu.dot_dimension_numbers<[1], [0], [0], [1], [0, 0, 1, 1], [], []>} : vector<8x256xf32>, vector<256x128xf32>, vector<8x128xf32> -> vector<8x128xf32>
    %c0_14 = arith.constant 0 : index
    %c0_15 = arith.constant 0 : index
    %14 = vector.load %arg7[%c0_14, %c0_15] : memref<1x128xf32, #tpu.memory_space<vmem>>, vector<1x128xf32>
    %15 = vector.broadcast %14 : vector<1x128xf32> to vector<8x128xf32>
    %16 = arith.addf %13, %15 : vector<8x128xf32>
    %cst_16 = arith.constant 0.000000e+00 : f32
    %17 = vector.broadcast %cst_16 : f32 to vector<8x128xf32>
    %18 = arith.maximumf %16, %17 : vector<8x128xf32>
    %c0_17 = arith.constant 0 : index
    %c0_18 = arith.constant 0 : index
    %19 = vector.load %arg8[%c0_17, %c0_18] : memref<1x128xf32, #tpu.memory_space<vmem>>, vector<1x128xf32>
    "tpu.trace_start"() <{level = 10 : i32, message = "ok,bk->ob"}> : () -> ()
    %cst_19 = arith.constant dense<0.000000e+00> : vector<1x8xf32>
    %20 = tpu.matmul %19, %18, %cst_19 {dimension_numbers = #tpu.dot_dimension_numbers<[1], [1], [0], [0], [0, 0, 1, 0], [], []>} : vector<1x128xf32>, vector<8x128xf32>, vector<1x8xf32> -> vector<1x8xf32>
    "tpu.trace_stop"() : () -> ()
    %c0_20 = arith.constant 0 : index
    %c0_21 = arith.constant 0 : index
    %21 = vector.load %arg9[%c0_20, %c0_21] : memref<1x1xf32, #tpu.memory_space<vmem>>, vector<1x1xf32>
    %22 = vector.broadcast %21 : vector<1x1xf32> to vector<1x8xf32>
    %23 = arith.addf %20, %22 : vector<1x8xf32>
    %c0_22 = arith.constant 0 : index
    %c0_23 = arith.constant 0 : index
    %24 = vector.load %arg10[%c0_22, %c0_23] : memref<1x8xf32, #tpu.memory_space<vmem>>, vector<1x8xf32>
    tpu.vector_store %arg10[%c0_22, %c0_23], %23 {strides = array<i32>} : memref<1x8xf32, #tpu.memory_space<vmem>>, vector<1x8xf32>,
    return
  }
  func.func @transform_0(%arg0: i32) -> (i32, i32) {
    %c0_i32 = arith.constant 0 : i32
    %c0_i32_0 = arith.constant 0 : i32
    return %arg0, %c0_i32 : i32, i32
  }
  func.func @transform_1(%arg0: i32) -> (i32, i32) {
    %c0_i32 = arith.constant 0 : i32
    %c0_i32_0 = arith.constant 0 : i32
    return %arg0, %c0_i32 : i32, i32
  }
  func.func @transform_2(%arg0: i32) -> (i32, i32) {
    %c0_i32 = arith.constant 0 : i32
    %c0_i32_0 = arith.constant 0 : i32
    %c0_i32_1 = arith.constant 0 : i32
    return %c0_i32, %c0_i32_0 : i32, i32
  }
  func.func @transform_3(%arg0: i32) -> (i32, i32) {
    %c0_i32 = arith.constant 0 : i32
    %c0_i32_0 = arith.constant 0 : i32
    %c0_i32_1 = arith.constant 0 : i32
    return %c0_i32, %c0_i32_0 : i32, i32
  }
  func.func @transform_4(%arg0: i32) -> (i32, i32) {
    %c0_i32 = arith.constant 0 : i32
    %c0_i32_0 = arith.constant 0 : i32
    %c0_i32_1 = arith.constant 0 : i32
    return %c0_i32, %c0_i32_0 : i32, i32
  }
  func.func @transform_5(%arg0: i32) -> (i32, i32) {
    %c0_i32 = arith.constant 0 : i32
    %c0_i32_0 = arith.constant 0 : i32
    %c0_i32_1 = arith.constant 0 : i32
    return %c0_i32, %c0_i32_0 : i32, i32
  }
  func.func @transform_6(%arg0: i32) -> (i32, i32) {
    %c0_i32 = arith.constant 0 : i32
    %c0_i32_0 = arith.constant 0 : i32
    %c0_i32_1 = arith.constant 0 : i32
    return %c0_i32, %c0_i32_0 : i32, i32
  }
  func.func @transform_7(%arg0: i32) -> (i32, i32) {
    %c0_i32 = arith.constant 0 : i32
    %c0_i32_0 = arith.constant 0 : i32
    %c0_i32_1 = arith.constant 0 : i32
    return %c0_i32, %c0_i32_0 : i32, i32
  }
  func.func @transform_8(%arg0: i32) -> (i32, i32) {
    %c0_i32 = arith.constant 0 : i32
    %c0_i32_0 = arith.constant 0 : i32
    %c0_i32_1 = arith.constant 0 : i32
    return %c0_i32, %c0_i32_0 : i32, i32
  }
  func.func @transform_9(%arg0: i32) -> (i32, i32) {
    %c0_i32 = arith.constant 0 : i32
    %c0_i32_0 = arith.constant 0 : i32
    return %c0_i32, %arg0 : i32, i32
  }
}

</mosaic_0001>

<llo_original>
// kernel: critic_forward.1
$region0: #{critic_forward.1}
  #allocation0 [shape = 'u32[]', space=smem, size = 0x4, offset = 0x4, fixed_abs, tag = 'smem constant byte address 0x4 - core index']
  #allocation1 [shape = 'u32[72,128]{1,0:T(1,128)}', space=vmem, size = 0x9000, scoped, tag = 'internal scratch']
  #allocation2 [shape = 'f32[1,1]{1,0:T(1,128)S(1)}', space=vmem, size = 0x200, scoped, tag = 'scoped memory for critic_forward.1']
  %s0 = inlined_call_operand.vmem [shape: f32[8,9], index: 0, kind: input, shape index: {}]
  %s1 = inlined_call_operand.vmem [shape: f32[8,3], index: 1, kind: input, shape index: {}]
  %s2 = inlined_call_operand.hbm [shape: f32[9,256], index: 2, kind: input, shape index: {}]
  %s3 = inlined_call_operand.vmem [shape: f32[3,256], index: 3, kind: input, shape index: {}]
  %s4 = inlined_call_operand.vmem [shape: f32[1,256], index: 4, kind: input, shape index: {}]
  %s5 = inlined_call_operand.hbm [shape: f32[256,128], index: 5, kind: input, shape index: {}]
  %s6 = inlined_call_operand.vmem [shape: f32[1,128], index: 6, kind: input, shape index: {}]
  %s7 = inlined_call_operand.vmem [shape: f32[1,128], index: 7, kind: input, shape index: {}]
  %s8 = inlined_call_operand.<no memory space> [shape: f32[1,1], index: 8, kind: input, shape index: {}]
  %s9 = inlined_call_operand.hbm [shape: f32[1,8], index: 9, kind: output, shape index: {}]
  %s10 = sld [smem:[#allocation0]]
  $region54: #{critic_forward.1} parent=0
    _
  %s12 = ssub.s32 1, %s10
  %s13 = scalar_select 0, %s12, %s10
  %v14 = vstv %s8
  %15 = vst [vmem:[#allocation2] sm:$0x1] %v14
  $region1: #{critic_forward.1} parent=0
    #allocation3 [shape = 'u8[16384]{0}', space=vmem, size = 0x4000, scoped, tag = 'input window, operand 2, single buffered']
    #allocation4 [shape = 's32[1]{0}', space=sflag, size = 0x4, scoped, tag = 'scoped memory for critic_forward.1']
    #allocation5 [shape = 's32[1]{0}', space=sflag, size = 0x4, scoped, tag = 'scoped memory for critic_forward.1']
    #allocation6 [shape = 'u8[131072]{0}', space=vmem, size = 0x20000, scoped, tag = 'input window, operand 5, single buffered']
    #allocation7 [shape = 's32[1]{0}', space=sflag, size = 0x4, scoped, tag = 'scoped memory for critic_forward.1']
    #allocation8 [shape = 'u8[512]{0}', space=vmem, size = 0x400, scoped, tag = 'output window, operand 0, single buffered']
    %16 = vsyncpa [#allocation4], 0
    %17 = vsyncpa [#allocation7], 0
    %18 = vsyncpa [#allocation5], 0
    // Predicated region
    $region2: #{critic_forward.1} parent=1 // pred_check
      _
    $region3: #{critic_forward.1} parent=1 // pred_check_branch
      %20 = sbr.rel (0) target = $region5
    $region4: #{critic_forward.1} parent=1 // pred_region
      _
    $region5: #{critic_forward.1} parent=1 // pred_fallthru
      _
    // Predicated region
    $region6: #{critic_forward.1} parent=1 // pred_check
      _
    $region7: #{critic_forward.1} parent=1 // pred_check_branch
      %22 = sbr.rel (0) target = $region9
    $region8: #{critic_forward.1} parent=1 // pred_region
      _
    $region9: #{critic_forward.1} parent=1 // pred_fallthru
      _
    // Predicated region
    $region10: #{critic_forward.1} parent=1 // pred_check
      _
    $region11: #{critic_forward.1} parent=1 // pred_check_branch
      %24 = sbr.rel (0) target = $region13
    $region12: #{critic_forward.1} parent=1 // pred_region
      %26 = vsyncadd [#allocation4], 0
      %s27 = sshll.u32 %s2, 4
      %s28 = int_to_ptr.hbm [resolvable:$true] %s27
      %s29 = sshll.u32 [#allocation3], 4
      %s30 = int_to_ptr.vmem [resolvable:$true] %s29
      %35 = dma.hbm_to_vmem [thread:$0]  %s28, 512, %s30, [#allocation4], 256, 256, 16
    $region13: #{critic_forward.1} parent=1 // pred_fallthru
      _
    // Predicated region
    $region14: #{critic_forward.1} parent=1 // pred_check
      _
    $region15: #{critic_forward.1} parent=1 // pred_check_branch
      %37 = sbr.rel (0) target = $region17
    $region16: #{critic_forward.1} parent=1 // pred_region
      _
    $region17: #{critic_forward.1} parent=1 // pred_fallthru
      _
    // Predicated region
    $region18: #{critic_forward.1} parent=1 // pred_check
      _
    $region19: #{critic_forward.1} parent=1 // pred_check_branch
      %39 = sbr.rel (0) target = $region21
    $region20: #{critic_forward.1} parent=1 // pred_region
      _
    $region21: #{critic_forward.1} parent=1 // pred_fallthru
      _
    // Predicated region
    $region22: #{critic_forward.1} parent=1 // pred_check
      _
    $region23: #{critic_forward.1} parent=1 // pred_check_branch
      %41 = sbr.rel (0) target = $region25
    $region24: #{critic_forward.1} parent=1 // pred_region
      %43 = vsyncadd [#allocation7], 0
      %s44 = sshll.u32 %s5, 4
      %s45 = int_to_ptr.hbm [resolvable:$true] %s44
      %s46 = sshll.u32 [#allocation6], 4
      %s47 = int_to_ptr.vmem [resolvable:$true] %s46
      %52 = dma.hbm_to_vmem [thread:$0]  %s45, 4096, %s47, [#allocation7], 128, 128, 8
    $region25: #{critic_forward.1} parent=1 // pred_fallthru
      _
    // Predicated region
    $region26: #{critic_forward.1} parent=1 // pred_check
      _
    $region27: #{critic_forward.1} parent=1 // pred_check_branch
      %54 = sbr.rel (0) target = $region29
    $region28: #{critic_forward.1} parent=1 // pred_region
      _
    $region29: #{critic_forward.1} parent=1 // pred_fallthru
      _
    // Predicated region
    $region30: #{critic_forward.1} parent=1 // pred_check
      _
    $region31: #{critic_forward.1} parent=1 // pred_check_branch
      %56 = sbr.rel (0) target = $region33
    $region32: #{critic_forward.1} parent=1 // pred_region
      _
    $region33: #{critic_forward.1} parent=1 // pred_fallthru
      _
    // Predicated region
    $region34: #{critic_forward.1} parent=1 // pred_check
      _
    $region35: #{critic_forward.1} parent=1 // pred_check_branch
      %58 = sbr.rel (0) target = $region37
    $region36: #{critic_forward.1} parent=1 // pred_region
      _
    $region37: #{critic_forward.1} parent=1 // pred_fallthru
      _
    // Predicated region
    $region38: #{critic_forward.1} parent=1 // pred_check
      _
    $region39: #{critic_forward.1} parent=1 // pred_check_branch
      %60 = sbr.rel (0) target = $region41
    $region40: #{critic_forward.1} parent=1 // pred_region
      %62 = dma.done [#allocation4], 512
    $region41: #{critic_forward.1} parent=1 // pred_fallthru
      _
    // Predicated region
    $region42: #{critic_forward.1} parent=1 // pred_check
      _
    $region43: #{critic_forward.1} parent=1 // pred_check_branch
      %64 = sbr.rel (0) target = $region45
    $region44: #{critic_forward.1} parent=1 // pred_region
      %66 = dma.done [#allocation7], 4096
    $region45: #{critic_forward.1} parent=1 // pred_fallthru
      _
    %v67 = vld [vmem:[%s0] sm:$0xff]
    %v68 = vld [vmem:[%s1] sm:$0xff]
    %v69 = vld [vmem:[#allocation3] sm:$0xff]
    %v70 = vld [vmem:[#allocation3 + $0x8] sm:$0xff]
    %v71 = vld [vmem:[#allocation3 + $0x10] sm:$0x1]
    %v72 = vld [vmem:[#allocation3 + $0x18] sm:$0x1]
    %v73 = vld [vmem:[%s3] sm:$0x77]
    %75 = vst [vmem:[#allocation1] ss:$2 sm:$0xff] %v73
    %v76 = vld.sshfl [vmem:[#allocation1] sm:$0xff pattern:$0x75316420]
    %v77 = vld.sshfl [vmem:[#allocation1 + $0x8] sm:$0xff pattern:$0x75316420]
    %vm78 = vcmask 23552
    %v80 = vsel %vm78, %v68, 0
    %vm82 = vcmask 1042432
    %v83 = vsel %vm82, %v76, 0
    %v85 = vsel %vm82, %v77, 0
    %87 = vmatpush.msra.mxu0 0.0
    %88 = vmatpush.msra.mxu0 0.0
    %89 = vmatpush.msra.mxu0 0.0
    %90 = vmatpush.msra.mxu0 0.0
    %91 = vmatpush.msra.mxu0 0.0
    %92 = vmatpush.msra.mxu0 0.0
    %93 = vmatpush.msra.mxu0 0.0
    %94 = vmatpush.msra.mxu0 0.0
    %95 = vmatpush.msra.mxu0 0.0
    %96 = vmatpush.msra.mxu0 0.0
    %97 = vmatpush.msra.mxu0 0.0
    %98 = vmatpush.msra.mxu0 0.0
    %99 = vmatpush.msra.mxu0 0.0
    %100 = vmatpush.msra.mxu0 0.0
    %101 = vmatpush.msra.mxu0 0.0
    %102 = vmatpush.msra.mxu0 %v83
    %103 = vmatmul.f32.gmra.mxu0 %v80
    %v104 = vpop.f32.mrf.mxu0
    %v105 = vadd.f32 0.0, %v104
    %106 = vdwg.mxu0
    %107 = vmatpush.msra.mxu0 0.0
    %108 = vmatpush.msra.mxu0 0.0
    %109 = vmatpush.msra.mxu0 0.0
    %110 = vmatpush.msra.mxu0 0.0
    %111 = vmatpush.msra.mxu0 0.0
    %112 = vmatpush.msra.mxu0 0.0
    %113 = vmatpush.msra.mxu0 0.0
    %114 = vmatpush.msra.mxu0 0.0
    %115 = vmatpush.msra.mxu0 0.0
    %116 = vmatpush.msra.mxu0 0.0
    %117 = vmatpush.msra.mxu0 0.0
    %118 = vmatpush.msra.mxu0 0.0
    %119 = vmatpush.msra.mxu0 0.0
    %120 = vmatpush.msra.mxu0 0.0
    %121 = vmatpush.msra.mxu0 0.0
    %122 = vmatpush.msra.mxu0 %v85
    %123 = vmatmul.f32.gmra.mxu0 %v80
    %v124 = vpop.f32.mrf.mxu0
    %v125 = vadd.f32 0.0, %v124
    %126 = vdwg.mxu0
    %vm127 = vcmask 72704
    %v129 = vsel %vm127, %v67, 0
    %vm131 = vcmask 1040384
    %v133 = vsel %vm131, %v71, 0
    %v136 = vsel %vm131, %v72, 0
    %138 = vmatpush.msra.mxu0 0.0
    %139 = vmatpush.msra.mxu0 0.0
    %140 = vmatpush.msra.mxu0 0.0
    %141 = vmatpush.msra.mxu0 0.0
    %142 = vmatpush.msra.mxu0 0.0
    %143 = vmatpush.msra.mxu0 0.0
    %144 = vmatpush.msra.mxu0 0.0
    %145 = vmatpush.msra.mxu0 0.0
    %146 = vmatpush.msra.mxu0 0.0
    %147 = vmatpush.msra.mxu0 0.0
    %148 = vmatpush.msra.mxu0 0.0
    %149 = vmatpush.msra.mxu0 0.0
    %150 = vmatpush.msra.mxu0 0.0
    %151 = vmatpush.msra.mxu0 0.0
    %152 = vmatpush.msra.mxu0 %v133
    %153 = vmatpush.msra.mxu0 %v69
    %154 = vmatmul.f32.gmra.mxu0 %v129
    %v155 = vpop.f32.mrf.mxu0
    %v156 = vadd.f32 %v105, %v155
    %157 = vdwg.mxu0
    %158 = vmatpush.msra.mxu0 0.0
    %159 = vmatpush.msra.mxu0 0.0
    %160 = vmatpush.msra.mxu0 0.0
    %161 = vmatpush.msra.mxu0 0.0
    %162 = vmatpush.msra.mxu0 0.0
    %163 = vmatpush.msra.mxu0 0.0
    %164 = vmatpush.msra.mxu0 0.0
    %165 = vmatpush.msra.mxu0 0.0
    %166 = vmatpush.msra.mxu0 0.0
    %167 = vmatpush.msra.mxu0 0.0
    %168 = vmatpush.msra.mxu0 0.0
    %169 = vmatpush.msra.mxu0 0.0
    %170 = vmatpush.msra.mxu0 0.0
    %171 = vmatpush.msra.mxu0 0.0
    %172 = vmatpush.msra.mxu0 %v136
    %173 = vmatpush.msra.mxu0 %v70
    %174 = vmatmul.f32.gmra.mxu0 %v129
    %v175 = vpop.f32.mrf.mxu0
    %v176 = vadd.f32 %v125, %v175
    %177 = vdwg.mxu0
    %v178 = vld [vmem:[%s4] sm:$0x3]
    %v180 = vperm.slane %v178, 0
    %v181 = vperm.slane %v178, 1
    %v184 = vadd.f32 %v156, %v180
    %v185 = vadd.f32 %v176, %v181
    %v186 = vmax.f32 %v184, 0.0
    %v187 = vmax.f32 %v185, 0.0
    %v188 = vld [vmem:[#allocation6] sm:$0xff]
    %v189 = vld [vmem:[#allocation6 + $0x8] sm:$0xff]
    %v190 = vld [vmem:[#allocation6 + $0x10] sm:$0xff]
    %v191 = vld [vmem:[#allocation6 + $0x18] sm:$0xff]
    %v192 = vld [vmem:[#allocation6 + $0x20] sm:$0xff]
    %v193 = vld [vmem:[#allocation6 + $0x28] sm:$0xff]
    %v194 = vld [vmem:[#allocation6 + $0x30] sm:$0xff]
    %v195 = vld [vmem:[#allocation6 + $0x38] sm:$0xff]
    %v196 = vld [vmem:[#allocation6 + $0x40] sm:$0xff]
    %v197 = vld [vmem:[#allocation6 + $0x48] sm:$0xff]
    %v198 = vld [vmem:[#allocation6 + $0x50] sm:$0xff]
    %v199 = vld [vmem:[#allocation6 + $0x58] sm:$0xff]
    %v200 = vld [vmem:[#allocation6 + $0x60] sm:$0xff]
    %v201 = vld [vmem:[#allocation6 + $0x68] sm:$0xff]
    %v202 = vld [vmem:[#allocation6 + $0x70] sm:$0xff]
    %v203 = vld [vmem:[#allocation6 + $0x78] sm:$0xff]
    %v204 = vld [vmem:[#allocation6 + $0x80] sm:$0xff]
    %v205 = vld [vmem:[#allocation6 + $0x88] sm:$0xff]
    %v206 = vld [vmem:[#allocation6 + $0x90] sm:$0xff]
    %v207 = vld [vmem:[#allocation6 + $0x98] sm:$0xff]
    %v208 = vld [vmem:[#allocation6 + $0xa0] sm:$0xff]
    %v209 = vld [vmem:[#allocation6 + $0xa8] sm:$0xff]
    %v210 = vld [vmem:[#allocation6 + $0xb0] sm:$0xff]
    %v211 = vld [vmem:[#allocation6 + $0xb8] sm:$0xff]
    %v212 = vld [vmem:[#allocation6 + $0xc0] sm:$0xff]
    %v213 = vld [vmem:[#allocation6 + $0xc8] sm:$0xff]
    %v214 = vld [vmem:[#allocation6 + $0xd0] sm:$0xff]
    %v215 = vld [vmem:[#allocation6 + $0xd8] sm:$0xff]
    %v216 = vld [vmem:[#allocation6 + $0xe0] sm:$0xff]
    %v217 = vld [vmem:[#allocation6 + $0xe8] sm:$0xff]
    %v218 = vld [vmem:[#allocation6 + $0xf0] sm:$0xff]
    %v219 = vld [vmem:[#allocation6 + $0xf8] sm:$0xff]
    %v220 = vld [vmem:[%s6] sm:$0x1]
    %v222 = vperm.slane %v220, 0
    %224 = vmatpush.msra.mxu0 %v203
    %225 = vmatpush.msra.mxu0 %v202
    %226 = vmatpush.msra.mxu0 %v201
    %227 = vmatpush.msra.mxu0 %v200
    %228 = vmatpush.msra.mxu0 %v199
    %229 = vmatpush.msra.mxu0 %v198
    %230 = vmatpush.msra.mxu0 %v197
    %231 = vmatpush.msra.mxu0 %v196
    %232 = vmatpush.msra.mxu0 %v195
    %233 = vmatpush.msra.mxu0 %v194
    %234 = vmatpush.msra.mxu0 %v193
    %235 = vmatpush.msra.mxu0 %v192
    %236 = vmatpush.msra.mxu0 %v191
    %237 = vmatpush.msra.mxu0 %v190
    %238 = vmatpush.msra.mxu0 %v189
    %239 = vmatpush.msra.mxu0 %v188
    %240 = vmatmul.f32.gmra.mxu0 %v186
    %v241 = vpop.f32.mrf.mxu0
    %v242 = vadd.f32 %v222, %v241
    %243 = vdwg.mxu0
    %244 = vmatpush.msra.mxu0 %v219
    %245 = vmatpush.msra.mxu0 %v218
    %246 = vmatpush.msra.mxu0 %v217
    %247 = vmatpush.msra.mxu0 %v216
    %248 = vmatpush.msra.mxu0 %v215
    %249 = vmatpush.msra.mxu0 %v214
    %250 = vmatpush.msra.mxu0 %v213
    %251 = vmatpush.msra.mxu0 %v212
    %252 = vmatpush.msra.mxu0 %v211
    %253 = vmatpush.msra.mxu0 %v210
    %254 = vmatpush.msra.mxu0 %v209
    %255 = vmatpush.msra.mxu0 %v208
    %256 = vmatpush.msra.mxu0 %v207
    %257 = vmatpush.msra.mxu0 %v206
    %258 = vmatpush.msra.mxu0 %v205
    %259 = vmatpush.msra.mxu0 %v204
    %260 = vmatmul.f32.gmra.mxu0 %v187
    %v261 = vpop.f32.mrf.mxu0
    %v262 = vadd.f32 %v242, %v261
    %263 = vdwg.mxu0
    %v264 = vmax.f32 %v262, 0.0
    %v265 = vld [vmem:[%s7] sm:$0x1]
    %v266 = vld [vmem:[#allocation2] sm:$0x1]
    %268 = vset.pattern.permute.xlu0 0
    %269 = vperm.xlu0 %268, %v266
    %v270 = vpop.permute.xlu0 %269
    %v272 = vperm.slane %v270, 0
    %273 = vmatpush.xpose.msra.mxu0 0.0
    %274 = vmatpush.xpose.msra.mxu0 0.0
    %275 = vmatpush.xpose.msra.mxu0 0.0
    %276 = vmatpush.xpose.msra.mxu0 0.0
    %277 = vmatpush.xpose.msra.mxu0 0.0
    %278 = vmatpush.xpose.msra.mxu0 0.0
    %279 = vmatpush.xpose.msra.mxu0 0.0
    %280 = vmatpush.xpose.msra.mxu0 0.0
    %281 = vmatpush.xpose.msra.mxu0 0.0
    %282 = vmatpush.xpose.msra.mxu0 0.0
    %283 = vmatpush.xpose.msra.mxu0 0.0
    %284 = vmatpush.xpose.msra.mxu0 0.0
    %285 = vmatpush.xpose.msra.mxu0 0.0
    %286 = vmatpush.xpose.msra.mxu0 0.0
    %287 = vmatpush.xpose.msra.mxu0 0.0
    %288 = vmatpush.xpose.msra.mxu0 %v264
    %289 = vmatmul.f32.gmra.mxu0 %v265
    %v290 = vpop.f32.mrf.mxu0
    %v291 = vadd.f32 %v272, %v290
    %292 = vdwg.mxu0
    %vm293 = vcmask 57344
    %294 = vst.msk [vmem:[#allocation8] sm:$0x1] %vm293, %v291
    // Predicated region
    $region46: #{critic_forward.1} parent=1 // pred_check
      _
    $region47: #{critic_forward.1} parent=1 // pred_check_branch
      %296 = sbr.rel (0) target = $region49
    $region48: #{critic_forward.1} parent=1 // pred_region
      %298 = vsyncadd [#allocation5], 0
      %s300 = sshll.u32 [#allocation8], 4
      %s301 = int_to_ptr.vmem [resolvable:$true] %s300
      %s302 = sshll.u32 %s9, 4
      %s303 = int_to_ptr.hbm [resolvable:$true] %s302
      %305 = dma.vmem_to_hbm [thread:$0]  %s301, 16, %s303, [#allocation5]
    $region49: #{critic_forward.1} parent=1 // pred_fallthru
      _
    // Predicated region
    $region50: #{critic_forward.1} parent=1 // pred_check
      _
    $region51: #{critic_forward.1} parent=1 // pred_check_branch
      %307 = sbr.rel (0) target = $region53
    $region52: #{critic_forward.1} parent=1 // pred_region
      %309 = dma.done [#allocation5], 16
    $region53: #{critic_forward.1} parent=1 // pred_fallthru
      _
    %310 = vsyncpa [#allocation4], 1
    %311 = vsyncpa [#allocation7], 1
    %312 = vsyncpa [#allocation5], 1

</llo_original>
